<compile_context>
chip_gen: v5e
topology: v5e:2x2
jax: 0.10.0
libtpu: 0.0.40
codegen_flags: <defaults>
</compile_context>

<pallas_src>
import jax
import jax.numpy as jnp
from jax.experimental import pallas as pl
from jax.experimental.pallas import tpu as pltpu


# --------------------------------------------------------------------------- #
# Kernel
# --------------------------------------------------------------------------- #
def reflex_kernel(x_ref, w1_ref, b1_ref, w2_ref, b2_ref, w3_ref, b3_ref, o_ref):
    """Fused packed-MLP tile.

    x_ref : [tb, state_dim*P]   streamed activations (compute dtype, bf16)
    w*_ref: block-diagonal packed weights (compute dtype, resident in VMEM)
    b*_ref: P-tiled biases (f32, resident in VMEM)
    o_ref : [tb, reflex_dim*P]  lane-dense packed output

    MXU matmuls take bf16 operands with f32 accumulation; all elementwise math
    (bias add, LeakyReLU, sigmoid) runs on the f32 accumulator (v5e-safe).
    """
    neg_slope = jnp.float32(0.01)  # F.leaky_relu default negative_slope

    x = x_ref[...]  # bf16 (or f32 if compute_dtype=f32) straight into the MXU

    # layer1 + leaky_relu
    h1 = jnp.dot(x, w1_ref[...], preferred_element_type=jnp.float32) + b1_ref[...]
    h1 = jnp.where(h1 > 0, h1, neg_slope * h1)

    # layer2 + leaky_relu
    h2 = jnp.dot(h1.astype(w2_ref.dtype), w2_ref[...],
                 preferred_element_type=jnp.float32) + b2_ref[...]
    h2 = jnp.where(h2 > 0, h2, neg_slope * h2)

    # output_layer + sigmoid
    logits = jnp.dot(h2.astype(w3_ref.dtype), w3_ref[...],
                     preferred_element_type=jnp.float32) + b3_ref[...]
    o_ref[...] = jax.nn.sigmoid(logits).astype(o_ref.dtype)


# --------------------------------------------------------------------------- #
# Wrapper
# --------------------------------------------------------------------------- #
def _round_up(x, m):
    return ((x + m - 1) // m) * m


def _default_pack():
    """P=4 fills v5e's 4x128^2 MXU; P=8 fills v6e/v7x's 2x256^2 MXU."""
    try:
        kind = jax.devices()[0].device_kind.lower()
        if "v5 lite" in kind or "v5e" in kind or "v5lite" in kind:
            return 4
    except Exception:
        pass
    return 8


def pack_params(params, pack, compute_dtype=jnp.bfloat16):
    """Block-diagonal-pack the tiny MLP so P batch rows share one MXU pass."""
    w1, b1, w2, b2, w3, b3 = params
    eye = jnp.eye(pack, dtype=jnp.float32)
    w1p = jnp.kron(eye, w1).astype(compute_dtype)      # [D*P,  32*P]
    w2p = jnp.kron(eye, w2).astype(compute_dtype)      # [32*P, 16*P]
    w3p = jnp.kron(eye, w3).astype(compute_dtype)      # [16*P, 5*P]
    b1p = jnp.tile(b1, (1, pack)).astype(jnp.float32)  # [1, 32*P]
    b2p = jnp.tile(b2, (1, pack)).astype(jnp.float32)  # [1, 16*P]
    b3p = jnp.tile(b3, (1, pack)).astype(jnp.float32)  # [1, 5*P]
    return (w1p, b1p, w2p, b2p, w3p, b3p)


def reflex_forward(state, params, *, block_b=8192, pack=None,
                   compute_dtype=jnp.bfloat16, out_dtype=jnp.float32):
    """Batch-tiled, batch-row-packed fused forward pass.

    state : [B, state_dim]
    params: (w1[state_dim,32], b1[1,32], w2[32,16], b2[1,16],
             w3[16,reflex_dim], b3[1,reflex_dim]), all f32.
    block_b: batch tile size in ORIGINAL rows (packed tile = block_b // pack).
    """
    w1, b1, w2, b2, w3, b3 = params
    B, state_dim = state.shape
    hid1, hid2, reflex_dim = w1.shape[1], w2.shape[1], w3.shape[1]

    if pack is None:
        pack = _default_pack()

    # ---- pack P batch rows into the lane/contraction dimension --------------
    B_pad = _round_up(max(B, 1), pack)
    x = state.astype(compute_dtype)
    if B_pad != B:
        # zero padding rows: each packed row is block-independent, and the
        # padded output rows are sliced off below, so they never contaminate
        # valid rows.
        x = jnp.pad(x, ((0, B_pad - B), (0, 0)))
    Bp = B_pad // pack
    x_packed = x.reshape(Bp, state_dim * pack)

    w1p, b1p, w2p, b2p, w3p, b3p = pack_params(
        (w1, b1, w2, b2, w3, b3), pack, compute_dtype)

    # ---- batch tiling (in packed rows) --------------------------------------
    # bf16 streaming packs 2 rows / sublane -> tb must be a multiple of 16
    # (8 suffices for f32), unless the tile spans the full packed batch.
    row_mult = 16 if jnp.dtype(compute_dtype).itemsize == 2 else 8
    blk_packed = max(1, block_b // pack)
    if Bp <= blk_packed:
        tb = Bp                                       # single full-extent block
    else:
        tb = max(row_mult, (blk_packed // row_mult) * row_mult)
    num_tiles = pl.cdiv(Bp, tb)

    # ---- VMEM budget (lane-padded, double-buffered streamed tiles) ----------
    lane = 128
    bpe_c = jnp.dtype(compute_dtype).itemsize
    bpe_o = jnp.dtype(out_dtype).itemsize
    in_tile = tb * _round_up(state_dim * pack, lane) * bpe_c
    out_tile = tb * _round_up(reflex_dim * pack, lane) * bpe_o
    tmp_tile = tb * (_round_up(hid1 * pack, lane)
                     + _round_up(hid2 * pack, lane)
                     + _round_up(reflex_dim * pack, lane)) * (4 + bpe_c)
    wbytes = sum(int(p.size) * p.dtype.itemsize
                 for p in (w1p, b1p, w2p, b2p, w3p, b3p))
    footprint = 2 * (in_tile + out_tile) + 2 * wbytes + tmp_tile
    # 2x headroom, floor 16 MiB, cap 48 MiB so we never overshoot v7x's
    # 64 MiB/TC physical VMEM.
    vmem_limit = int(min(max(2 * footprint, 16 * 1024 * 1024), 48 * 1024 * 1024))

    # ---- cost estimate (actual packed MXU work + streamed bytes) ------------
    flops = 2 * B_pad * pack * (state_dim * hid1 + hid1 * hid2
                                + hid2 * reflex_dim)
    cost = pl.CostEstimate(
        flops=flops,
        transcendentals=B_pad * reflex_dim,           # sigmoid -> exp
        bytes_accessed=B_pad * state_dim * bpe_c
                       + B_pad * reflex_dim * bpe_o + wbytes,
    )

    # ---- specs ---------------------------------------------------------------
    # Streamed: packed activations / output. Resident (constant index_map):
    # packed weights + biases, fetched once for the whole grid.
    in_specs = [
        pl.BlockSpec((tb, state_dim * pack), lambda i: (i, 0)),   # state tile
        pl.BlockSpec(w1p.shape, lambda i: (0, 0)),                # W1 block-diag
        pl.BlockSpec(b1p.shape, lambda i: (0, 0)),                # b1 tiled
        pl.BlockSpec(w2p.shape, lambda i: (0, 0)),                # W2 block-diag
        pl.BlockSpec(b2p.shape, lambda i: (0, 0)),                # b2 tiled
        pl.BlockSpec(w3p.shape, lambda i: (0, 0)),                # W3 block-diag
        pl.BlockSpec(b3p.shape, lambda i: (0, 0)),                # b3 tiled
    ]
    out_specs = pl.BlockSpec((tb, reflex_dim * pack), lambda i: (i, 0))
    # NOTE: if the xprof trace ever shows exposed DMA after the MXU fixes, add
    # pipeline_mode=pl.Buffered(3) on in_specs[0] only.

    out_packed = pl.pallas_call(
        reflex_kernel,
        out_shape=jax.ShapeDtypeStruct((Bp, reflex_dim * pack), out_dtype),
        grid=(num_tiles,),
        in_specs=in_specs,
        out_specs=out_specs,
        compiler_params=pltpu.CompilerParams(
            # Batch axis is embarrassingly parallel -> v7x's 2 TensorCores can
            # split the grid; harmless on single-TC v5e/v6e.
            dimension_semantics=("parallel",),
            vmem_limit_bytes=vmem_limit,
        ),
        cost_estimate=cost,
    )(x_packed, w1p, b1p, w2p, b2p, w3p, b3p)

    # [B/P, 5P] -> [B_pad, 5] is a free row-major reshape; drop padded rows.
    out = out_packed.reshape(B_pad, reflex_dim)
    if B_pad != B:
        out = out[:B]
    return out


# --------------------------------------------------------------------------- #
# Init / reference
# --------------------------------------------------------------------------- #
def xavier_uniform(key, out_features, in_features):
    """Matches nn.init.xavier_uniform_ on a [out, in] PyTorch weight, then
    returns it transposed to [in, out] for the kernel's x @ W layout."""
    bound = (6.0 / (in_features + out_features)) ** 0.5
    w_torch_layout = jax.random.uniform(
        key, (out_features, in_features), jnp.float32, minval=-bound, maxval=bound
    )
    return w_torch_layout.T


def init_params(key, state_dim, reflex_dim=5):
    k1, k2, k3 = jax.random.split(key, 3)
    w1 = xavier_uniform(k1, 32, state_dim)          # [state_dim, 32]
    b1 = jnp.zeros((1, 32), jnp.float32)
    w2 = xavier_uniform(k2, 16, 32)                 # [32, 16]
    b2 = jnp.zeros((1, 16), jnp.float32)
    w3 = xavier_uniform(k3, reflex_dim, 16)         # [16, reflex_dim]
    b3 = jnp.zeros((1, reflex_dim), jnp.float32)
    return (w1, b1, w2, b2, w3, b3)


def reflex_reference(state, params):
    """Pure-JAX f32 reference for sanity checking."""
    w1, b1, w2, b2, w3, b3 = params
    x = state.astype(jnp.float32)
    h1 = x @ w1 + b1
    h1 = jnp.where(h1 > 0, h1, 0.01 * h1)
    h2 = h1 @ w2 + b2
    h2 = jnp.where(h2 > 0, h2, 0.01 * h2)
    return jax.nn.sigmoid(h2 @ w3 + b3)


# --------------------------------------------------------------------------- #
# Demo / checks
# --------------------------------------------------------------------------- #
if __name__ == "__main__":
    key = jax.random.PRNGKey(0)
    k_param, k_state, k_big = jax.random.split(key, 3)

    state_dim = 32
    reflex_dim = 5
    params = init_params(k_param, state_dim, reflex_dim)

    # --- small-shape demo: bf16-operand fast path (default) -----------------
    batch = 8
    state = jax.random.normal(k_state, (batch, state_dim), jnp.float32)
    out = jax.block_until_ready(reflex_forward(state, params))
    ref = reflex_reference(state, params)
    assert out.shape == (batch, reflex_dim)
    assert jnp.allclose(out, ref, atol=2e-2, rtol=2e-2), \
        float(jnp.max(jnp.abs(out - ref)))

    # --- exact f32 compute path (tight check) --------------------------------
    out_f32 = jax.block_until_ready(
        reflex_forward(state, params, compute_dtype=jnp.float32))
    assert jnp.allclose(out_f32, ref, atol=1e-5, rtol=1e-5)

    # --- multi-tile + pack-padding path (B not a multiple of P, partial tile)-
    big_batch = 203
    state_big = jax.random.normal(k_big, (big_batch, state_dim), jnp.float32)
    out_big = jax.block_until_ready(
        reflex_forward(state_big, params, block_b=128))
    ref_big = reflex_reference(state_big, params)
    assert out_big.shape == (big_batch, reflex_dim)
    assert jnp.allclose(out_big, ref_big, atol=2e-2, rtol=2e-2)

    print("KERNEL_OK")
</pallas_src>

<mosaic_0001>
module attributes {stable_mosaic.version = 11 : i64} {
  func.func @reflex_kernel(%arg0: i32, %arg1: memref<1x256xbf16, #tpu.memory_space<vmem>>, %arg2: memref<256x256xbf16, #tpu.memory_space<vmem>>, %arg3: memref<1x256xf32, #tpu.memory_space<vmem>>, %arg4: memref<256x128xbf16, #tpu.memory_space<vmem>>, %arg5: memref<1x128xf32, #tpu.memory_space<vmem>>, %arg6: memref<128x40xbf16, #tpu.memory_space<vmem>>, %arg7: memref<1x40xf32, #tpu.memory_space<vmem>>, %arg8: memref<1x40xf32, #tpu.memory_space<vmem>>) attributes {dimension_semantics = [#tpu.dimension_semantics<parallel>], iteration_bounds = array<i64: 1>, scalar_prefetch = 0 : i64, scratch_operands = 0 : i64, tpu.core_type = #tpu.core_type<tc>, window_params = [{transform_indices = @transform_0, window_bounds = array<i64: 1, 256>}, {pipeline_mode = #tpu.pipeline_mode<synchronous>, transform_indices = @transform_1, window_bounds = array<i64: 256, 256>}, {pipeline_mode = #tpu.pipeline_mode<synchronous>, transform_indices = @transform_2, window_bounds = array<i64: 1, 256>}, {pipeline_mode = #tpu.pipeline_mode<synchronous>, transform_indices = @transform_3, window_bounds = array<i64: 256, 128>}, {pipeline_mode = #tpu.pipeline_mode<synchronous>, transform_indices = @transform_4, window_bounds = array<i64: 1, 128>}, {pipeline_mode = #tpu.pipeline_mode<synchronous>, transform_indices = @transform_5, window_bounds = array<i64: 128, 40>}, {pipeline_mode = #tpu.pipeline_mode<synchronous>, transform_indices = @transform_6, window_bounds = array<i64: 1, 40>}, {transform_indices = @transform_7, window_bounds = array<i64: 1, 40>}]} {
    %c0 = arith.constant 0 : index
    %c0_0 = arith.constant 0 : index
    %0 = vector.load %arg1[%c0, %c0_0] : memref<1x256xbf16, #tpu.memory_space<vmem>>, vector<1x256xbf16>
    %c0_1 = arith.constant 0 : index
    %c0_2 = arith.constant 0 : index
    %1 = vector.load %arg2[%c0_1, %c0_2] : memref<256x256xbf16, #tpu.memory_space<vmem>>, vector<256x256xbf16>
    %cst = arith.constant dense<0.000000e+00> : vector<1x256xf32>
    %2 = tpu.matmul %0, %1, %cst {dimension_numbers = #tpu.dot_dimension_numbers<[1], [0], [0], [1], [0, 0, 1, 1], [], []>} : vector<1x256xbf16>, vector<256x256xbf16>, vector<1x256xf32> -> vector<1x256xf32>
    %c0_3 = arith.constant 0 : index
    %c0_4 = arith.constant 0 : index
    %3 = vector.load %arg3[%c0_3, %c0_4] : memref<1x256xf32, #tpu.memory_space<vmem>>, vector<1x256xf32>
    %4 = arith.addf %2, %3 : vector<1x256xf32>
    %cst_5 = arith.constant 0.000000e+00 : f32
    %5 = vector.broadcast %cst_5 : f32 to vector<1x256xf32>
    %6 = arith.cmpf ogt, %4, %5 : vector<1x256xf32>
    %cst_6 = arith.constant 0.00999999977 : f32
    %7 = vector.broadcast %cst_6 : f32 to vector<1x256xf32>
    %8 = arith.mulf %7, %4 : vector<1x256xf32>
    %9 = arith.select %6, %4, %8 : vector<1x256xi1>, vector<1x256xf32>
    %10 = arith.truncf %9 : vector<1x256xf32> to vector<1x256xbf16>
    %c0_7 = arith.constant 0 : index
    %c0_8 = arith.constant 0 : index
    %11 = vector.load %arg4[%c0_7, %c0_8] : memref<256x128xbf16, #tpu.memory_space<vmem>>, vector<256x128xbf16>
    %cst_9 = arith.constant dense<0.000000e+00> : vector<1x128xf32>
    %12 = tpu.matmul %10, %11, %cst_9 {dimension_numbers = #tpu.dot_dimension_numbers<[1], [0], [0], [1], [0, 0, 1, 1], [], []>} : vector<1x256xbf16>, vector<256x128xbf16>, vector<1x128xf32> -> vector<1x128xf32>
    %c0_10 = arith.constant 0 : index
    %c0_11 = arith.constant 0 : index
    %13 = vector.load %arg5[%c0_10, %c0_11] : memref<1x128xf32, #tpu.memory_space<vmem>>, vector<1x128xf32>
    %14 = arith.addf %12, %13 : vector<1x128xf32>
    %cst_12 = arith.constant 0.000000e+00 : f32
    %15 = vector.broadcast %cst_12 : f32 to vector<1x128xf32>
    %16 = arith.cmpf ogt, %14, %15 : vector<1x128xf32>
    %cst_13 = arith.constant 0.00999999977 : f32
    %17 = vector.broadcast %cst_13 : f32 to vector<1x128xf32>
    %18 = arith.mulf %17, %14 : vector<1x128xf32>
    %19 = arith.select %16, %14, %18 : vector<1x128xi1>, vector<1x128xf32>
    %20 = arith.truncf %19 : vector<1x128xf32> to vector<1x128xbf16>
    %c0_14 = arith.constant 0 : index
    %c0_15 = arith.constant 0 : index
    %21 = vector.load %arg6[%c0_14, %c0_15] : memref<128x40xbf16, #tpu.memory_space<vmem>>, vector<128x40xbf16>
    %cst_16 = arith.constant dense<0.000000e+00> : vector<1x40xf32>
    %22 = tpu.matmul %20, %21, %cst_16 {dimension_numbers = #tpu.dot_dimension_numbers<[1], [0], [0], [1], [0, 0, 1, 1], [], []>} : vector<1x128xbf16>, vector<128x40xbf16>, vector<1x40xf32> -> vector<1x40xf32>
    %c0_17 = arith.constant 0 : index
    %c0_18 = arith.constant 0 : index
    %23 = vector.load %arg7[%c0_17, %c0_18] : memref<1x40xf32, #tpu.memory_space<vmem>>, vector<1x40xf32>
    %24 = arith.addf %22, %23 : vector<1x40xf32>
    %25 = arith.negf %24 : vector<1x40xf32>
    %26 = math.exp %25 : vector<1x40xf32>
    %cst_19 = arith.constant 1.000000e+00 : f32
    %27 = vector.broadcast %cst_19 : f32 to vector<1x40xf32>
    %28 = arith.addf %27, %26 : vector<1x40xf32>
    %29 = arith.divf %27, %28 : vector<1x40xf32>
    %c0_20 = arith.constant 0 : index
    %c0_21 = arith.constant 0 : index
    %30 = vector.load %arg8[%c0_20, %c0_21] : memref<1x40xf32, #tpu.memory_space<vmem>>, vector<1x40xf32>
    tpu.vector_store %arg8[%c0_20, %c0_21], %29 {strides = array<i32>} : memref<1x40xf32, #tpu.memory_space<vmem>>, vector<1x40xf32>,
    return
  }
  func.func @transform_0(%arg0: i32) -> (i32, i32) {
    %c0_i32 = arith.constant 0 : i32
    %c0_i32_0 = arith.constant 0 : i32
    return %arg0, %c0_i32 : i32, i32
  }
  func.func @transform_1(%arg0: i32) -> (i32, i32) {
    %c0_i32 = arith.constant 0 : i32
    %c0_i32_0 = arith.constant 0 : i32
    %c0_i32_1 = arith.constant 0 : i32
    return %c0_i32, %c0_i32_0 : i32, i32
  }
  func.func @transform_2(%arg0: i32) -> (i32, i32) {
    %c0_i32 = arith.constant 0 : i32
    %c0_i32_0 = arith.constant 0 : i32
    %c0_i32_1 = arith.constant 0 : i32
    return %c0_i32, %c0_i32_0 : i32, i32
  }
  func.func @transform_3(%arg0: i32) -> (i32, i32) {
    %c0_i32 = arith.constant 0 : i32
    %c0_i32_0 = arith.constant 0 : i32
    %c0_i32_1 = arith.constant 0 : i32
    return %c0_i32, %c0_i32_0 : i32, i32
  }
  func.func @transform_4(%arg0: i32) -> (i32, i32) {
    %c0_i32 = arith.constant 0 : i32
    %c0_i32_0 = arith.constant 0 : i32
    %c0_i32_1 = arith.constant 0 : i32
    return %c0_i32, %c0_i32_0 : i32, i32
  }
  func.func @transform_5(%arg0: i32) -> (i32, i32) {
    %c0_i32 = arith.constant 0 : i32
    %c0_i32_0 = arith.constant 0 : i32
    %c0_i32_1 = arith.constant 0 : i32
    return %c0_i32, %c0_i32_0 : i32, i32
  }
  func.func @transform_6(%arg0: i32) -> (i32, i32) {
    %c0_i32 = arith.constant 0 : i32
    %c0_i32_0 = arith.constant 0 : i32
    %c0_i32_1 = arith.constant 0 : i32
    return %c0_i32, %c0_i32_0 : i32, i32
  }
  func.func @transform_7(%arg0: i32) -> (i32, i32) {
    %c0_i32 = arith.constant 0 : i32
    %c0_i32_0 = arith.constant 0 : i32
    return %arg0, %c0_i32 : i32, i32
  }
}

</mosaic_0001>

<llo_original>
// kernel: tpu_custom_call.1
$region0: #{tpu_custom_call.1}
  #allocation0 [shape = 'u32[]', space=smem, size = 0x4, offset = 0x4, fixed_abs, tag = 'smem constant byte address 0x4 - core index']
  #allocation1 [shape = 'u32[72,128]{1,0:T(1,128)}', space=vmem, size = 0x9000, scoped, tag = 'internal scratch']
  %s0 = inlined_call_operand.vmem [shape: bf16[1,256], index: 0, kind: input, shape index: {}]
  %s1 = inlined_call_operand.hbm [shape: bf16[256,256], index: 1, kind: input, shape index: {}]
  %s2 = inlined_call_operand.vmem [shape: f32[1,256], index: 2, kind: input, shape index: {}]
  %s3 = inlined_call_operand.hbm [shape: bf16[256,128], index: 3, kind: input, shape index: {}]
  %s4 = inlined_call_operand.vmem [shape: f32[1,128], index: 4, kind: input, shape index: {}]
  %s5 = inlined_call_operand.vmem [shape: bf16[128,40], index: 5, kind: input, shape index: {}]
  %s6 = inlined_call_operand.vmem [shape: f32[1,40], index: 6, kind: input, shape index: {}]
  %s7 = inlined_call_operand.hbm [shape: f32[1,40], index: 7, kind: output, shape index: {}]
  %s8 = sld [smem:[#allocation0]]
  $region46: #{tpu_custom_call.1} parent=0
    _
  %s10 = ssub.s32 1, %s8
  %s11 = scalar_select 0, %s10, %s8
  $region1: #{tpu_custom_call.1} parent=0
    #allocation2 [shape = 'u8[131072]{0}', space=vmem, size = 0x20000, scoped, tag = 'input window, operand 1, single buffered']
    #allocation3 [shape = 's32[1]{0}', space=sflag, size = 0x4, scoped, tag = 'scoped memory for tpu_custom_call.1']
    #allocation4 [shape = 's32[1]{0}', space=sflag, size = 0x4, scoped, tag = 'scoped memory for tpu_custom_call.1']
    #allocation5 [shape = 'u8[65536]{0}', space=vmem, size = 0x10000, scoped, tag = 'input window, operand 3, single buffered']
    #allocation6 [shape = 's32[1]{0}', space=sflag, size = 0x4, scoped, tag = 'scoped memory for tpu_custom_call.1']
    #allocation7 [shape = 'u8[512]{0}', space=vmem, size = 0x400, scoped, tag = 'output window, operand 0, single buffered']
    %12 = vsyncpa [#allocation3], 0
    %13 = vsyncpa [#allocation6], 0
    %14 = vsyncpa [#allocation4], 0
    // Predicated region
    $region2: #{tpu_custom_call.1} parent=1 // pred_check
      _
    $region3: #{tpu_custom_call.1} parent=1 // pred_check_branch
      %16 = sbr.rel (0) target = $region5
    $region4: #{tpu_custom_call.1} parent=1 // pred_region
      _
    $region5: #{tpu_custom_call.1} parent=1 // pred_fallthru
      _
    // Predicated region
    $region6: #{tpu_custom_call.1} parent=1 // pred_check
      _
    $region7: #{tpu_custom_call.1} parent=1 // pred_check_branch
      %18 = sbr.rel (0) target = $region9
    $region8: #{tpu_custom_call.1} parent=1 // pred_region
      %20 = vsyncadd [#allocation3], 0
      %s21 = sshll.u32 %s1, 4
      %s22 = int_to_ptr.hbm [resolvable:$true] %s21
      %s23 = sshll.u32 [#allocation2], 4
      %s24 = int_to_ptr.vmem [resolvable:$true] %s23
      %29 = dma.hbm_to_vmem [thread:$0]  %s22, 4096, %s24, [#allocation3], 128, 128, 8
    $region9: #{tpu_custom_call.1} parent=1 // pred_fallthru
      _
    // Predicated region
    $region10: #{tpu_custom_call.1} parent=1 // pred_check
      _
    $region11: #{tpu_custom_call.1} parent=1 // pred_check_branch
      %31 = sbr.rel (0) target = $region13
    $region12: #{tpu_custom_call.1} parent=1 // pred_region
      _
    $region13: #{tpu_custom_call.1} parent=1 // pred_fallthru
      _
    // Predicated region
    $region14: #{tpu_custom_call.1} parent=1 // pred_check
      _
    $region15: #{tpu_custom_call.1} parent=1 // pred_check_branch
      %33 = sbr.rel (0) target = $region17
    $region16: #{tpu_custom_call.1} parent=1 // pred_region
      %35 = vsyncadd [#allocation6], 0
      %s36 = sshll.u32 %s3, 4
      %s37 = int_to_ptr.hbm [resolvable:$true] %s36
      %s38 = sshll.u32 [#allocation5], 4
      %s39 = int_to_ptr.vmem [resolvable:$true] %s38
      %44 = dma.hbm_to_vmem [thread:$0]  %s37, 2048, %s39, [#allocation6], 64, 64, 4
    $region17: #{tpu_custom_call.1} parent=1 // pred_fallthru
      _
    // Predicated region
    $region18: #{tpu_custom_call.1} parent=1 // pred_check
      _
    $region19: #{tpu_custom_call.1} parent=1 // pred_check_branch
      %46 = sbr.rel (0) target = $region21
    $region20: #{tpu_custom_call.1} parent=1 // pred_region
      _
    $region21: #{tpu_custom_call.1} parent=1 // pred_fallthru
      _
    // Predicated region
    $region22: #{tpu_custom_call.1} parent=1 // pred_check
      _
    $region23: #{tpu_custom_call.1} parent=1 // pred_check_branch
      %48 = sbr.rel (0) target = $region25
    $region24: #{tpu_custom_call.1} parent=1 // pred_region
      _
    $region25: #{tpu_custom_call.1} parent=1 // pred_fallthru
      _
    // Predicated region
    $region26: #{tpu_custom_call.1} parent=1 // pred_check
      _
    $region27: #{tpu_custom_call.1} parent=1 // pred_check_branch
      %50 = sbr.rel (0) target = $region29
    $region28: #{tpu_custom_call.1} parent=1 // pred_region
      _
    $region29: #{tpu_custom_call.1} parent=1 // pred_fallthru
      _
    // Predicated region
    $region30: #{tpu_custom_call.1} parent=1 // pred_check
      _
    $region31: #{tpu_custom_call.1} parent=1 // pred_check_branch
      %52 = sbr.rel (0) target = $region33
    $region32: #{tpu_custom_call.1} parent=1 // pred_region
      %54 = dma.done [#allocation3], 4096
    $region33: #{tpu_custom_call.1} parent=1 // pred_fallthru
      _
    // Predicated region
    $region34: #{tpu_custom_call.1} parent=1 // pred_check
      _
    $region35: #{tpu_custom_call.1} parent=1 // pred_check_branch
      %56 = sbr.rel (0) target = $region37
    $region36: #{tpu_custom_call.1} parent=1 // pred_region
      %58 = dma.done [#allocation6], 2048
    $region37: #{tpu_custom_call.1} parent=1 // pred_fallthru
      _
    %v59 = vld [vmem:[%s0] sm:$0x3]
    %v60 = vld [vmem:[#allocation2] sm:$0xff]
    %v61 = vld [vmem:[#allocation2 + $0x8] sm:$0xff]
    %v62 = vld [vmem:[#allocation2 + $0x10] sm:$0xff]
    %v63 = vld [vmem:[#allocation2 + $0x18] sm:$0xff]
    %v64 = vld [vmem:[#allocation2 + $0x20] sm:$0xff]
    %v65 = vld [vmem:[#allocation2 + $0x28] sm:$0xff]
    %v66 = vld [vmem:[#allocation2 + $0x30] sm:$0xff]
    %v67 = vld [vmem:[#allocation2 + $0x38] sm:$0xff]
    %v68 = vld [vmem:[#allocation2 + $0x40] sm:$0xff]
    %v69 = vld [vmem:[#allocation2 + $0x48] sm:$0xff]
    %v70 = vld [vmem:[#allocation2 + $0x50] sm:$0xff]
    %v71 = vld [vmem:[#allocation2 + $0x58] sm:$0xff]
    %v72 = vld [vmem:[#allocation2 + $0x60] sm:$0xff]
    %v73 = vld [vmem:[#allocation2 + $0x68] sm:$0xff]
    %v74 = vld [vmem:[#allocation2 + $0x70] sm:$0xff]
    %v75 = vld [vmem:[#allocation2 + $0x78] sm:$0xff]
    %v76 = vld [vmem:[#allocation2 + $0x80] sm:$0xff]
    %v77 = vld [vmem:[#allocation2 + $0x88] sm:$0xff]
    %v78 = vld [vmem:[#allocation2 + $0x90] sm:$0xff]
    %v79 = vld [vmem:[#allocation2 + $0x98] sm:$0xff]
    %v80 = vld [vmem:[#allocation2 + $0xa0] sm:$0xff]
    %v81 = vld [vmem:[#allocation2 + $0xa8] sm:$0xff]
    %v82 = vld [vmem:[#allocation2 + $0xb0] sm:$0xff]
    %v83 = vld [vmem:[#allocation2 + $0xb8] sm:$0xff]
    %v84 = vld [vmem:[#allocation2 + $0xc0] sm:$0xff]
    %v85 = vld [vmem:[#allocation2 + $0xc8] sm:$0xff]
    %v86 = vld [vmem:[#allocation2 + $0xd0] sm:$0xff]
    %v87 = vld [vmem:[#allocation2 + $0xd8] sm:$0xff]
    %v88 = vld [vmem:[#allocation2 + $0xe0] sm:$0xff]
    %v89 = vld [vmem:[#allocation2 + $0xe8] sm:$0xff]
    %v90 = vld [vmem:[#allocation2 + $0xf0] sm:$0xff]
    %v91 = vld [vmem:[#allocation2 + $0xf8] sm:$0xff]
    %v92 = vld [vmem:[%s2] sm:$0x3]
    %94 = vst [vmem:[#allocation1] ss:$9 sm:$0xff] %v59
    %v95 = vld [vmem:[#allocation1] sm:$0xff]
    %v96 = vld [vmem:[#allocation1 + $0x9] sm:$0xff]
    %v131 = vunpack.c.l.b16 %v60
    %v132 = vunpack.c.h.b16 %v60
    %v133 = vunpack.c.l.b16 %v61
    %v134 = vunpack.c.h.b16 %v61
    %v135 = vunpack.c.l.b16 %v62
    %v136 = vunpack.c.h.b16 %v62
    %v137 = vunpack.c.l.b16 %v63
    %v138 = vunpack.c.h.b16 %v63
    %v139 = vunpack.c.l.b16 %v64
    %v140 = vunpack.c.h.b16 %v64
    %v141 = vunpack.c.l.b16 %v65
    %v142 = vunpack.c.h.b16 %v65
    %v143 = vunpack.c.l.b16 %v66
    %v144 = vunpack.c.h.b16 %v66
    %v145 = vunpack.c.l.b16 %v67
    %v146 = vunpack.c.h.b16 %v67
    %v147 = vunpack.c.l.b16 %v68
    %v148 = vunpack.c.h.b16 %v68
    %v149 = vunpack.c.l.b16 %v69
    %v150 = vunpack.c.h.b16 %v69
    %v151 = vunpack.c.l.b16 %v70
    %v152 = vunpack.c.h.b16 %v70
    %v153 = vunpack.c.l.b16 %v71
    %v154 = vunpack.c.h.b16 %v71
    %v155 = vunpack.c.l.b16 %v72
    %v156 = vunpack.c.h.b16 %v72
    %v157 = vunpack.c.l.b16 %v73
    %v158 = vunpack.c.h.b16 %v73
    %v159 = vunpack.c.l.b16 %v74
    %v160 = vunpack.c.h.b16 %v74
    %v161 = vunpack.c.l.b16 %v75
    %v162 = vunpack.c.h.b16 %v75
    %v163 = vunpack.c.l.b16 %v76
    %v164 = vunpack.c.h.b16 %v76
    %v165 = vunpack.c.l.b16 %v77
    %v166 = vunpack.c.h.b16 %v77
    %v167 = vunpack.c.l.b16 %v78
    %v168 = vunpack.c.h.b16 %v78
    %v169 = vunpack.c.l.b16 %v79
    %v170 = vunpack.c.h.b16 %v79
    %v171 = vunpack.c.l.b16 %v80
    %v172 = vunpack.c.h.b16 %v80
    %v173 = vunpack.c.l.b16 %v81
    %v174 = vunpack.c.h.b16 %v81
    %v175 = vunpack.c.l.b16 %v82
    %v176 = vunpack.c.h.b16 %v82
    %v177 = vunpack.c.l.b16 %v83
    %v178 = vunpack.c.h.b16 %v83
    %v179 = vunpack.c.l.b16 %v84
    %v180 = vunpack.c.h.b16 %v84
    %v181 = vunpack.c.l.b16 %v85
    %v182 = vunpack.c.h.b16 %v85
    %v183 = vunpack.c.l.b16 %v86
    %v184 = vunpack.c.h.b16 %v86
    %v185 = vunpack.c.l.b16 %v87
    %v186 = vunpack.c.h.b16 %v87
    %v187 = vunpack.c.l.b16 %v88
    %v188 = vunpack.c.h.b16 %v88
    %v189 = vunpack.c.l.b16 %v89
    %v190 = vunpack.c.h.b16 %v89
    %v191 = vunpack.c.l.b16 %v90
    %v192 = vunpack.c.h.b16 %v90
    %v193 = vunpack.c.l.b16 %v91
    %v194 = vunpack.c.h.b16 %v91
    %v195 = vpack.c.b16 %v133, %v131
    %v196 = vpack.c.b16 %v134, %v132
    %v197 = vpack.c.b16 %v137, %v135
    %v198 = vpack.c.b16 %v138, %v136
    %v199 = vpack.c.b16 %v141, %v139
    %v200 = vpack.c.b16 %v142, %v140
    %v201 = vpack.c.b16 %v145, %v143
    %v202 = vpack.c.b16 %v146, %v144
    %v203 = vpack.c.b16 %v149, %v147
    %v204 = vpack.c.b16 %v150, %v148
    %v205 = vpack.c.b16 %v153, %v151
    %v206 = vpack.c.b16 %v154, %v152
    %v207 = vpack.c.b16 %v157, %v155
    %v208 = vpack.c.b16 %v158, %v156
    %v209 = vpack.c.b16 %v161, %v159
    %v210 = vpack.c.b16 %v162, %v160
    %v211 = vpack.c.b16 %v165, %v163
    %v212 = vpack.c.b16 %v166, %v164
    %v213 = vpack.c.b16 %v169, %v167
    %v214 = vpack.c.b16 %v170, %v168
    %v215 = vpack.c.b16 %v173, %v171
    %v216 = vpack.c.b16 %v174, %v172
    %v217 = vpack.c.b16 %v177, %v175
    %v218 = vpack.c.b16 %v178, %v176
    %v219 = vpack.c.b16 %v181, %v179
    %v220 = vpack.c.b16 %v182, %v180
    %v221 = vpack.c.b16 %v185, %v183
    %v222 = vpack.c.b16 %v186, %v184
    %v223 = vpack.c.b16 %v189, %v187
    %v224 = vpack.c.b16 %v190, %v188
    %v225 = vpack.c.b16 %v193, %v191
    %v226 = vpack.c.b16 %v194, %v192
    %v260 = vperm.slane %v92, 0
    %v261 = vperm.slane %v92, 1
    %264 = vmatpush.bf16.msra.mxu0 %v209
    %265 = vmatpush.bf16.msra.mxu0 %v207
    %266 = vmatpush.bf16.msra.mxu0 %v205
    %267 = vmatpush.bf16.msra.mxu0 %v203
    %268 = vmatpush.bf16.msra.mxu0 %v201
    %269 = vmatpush.bf16.msra.mxu0 %v199
    %270 = vmatpush.bf16.msra.mxu0 %v197
    %271 = vmatpush.bf16.msra.mxu0 %v195
    %272 = vmatmul.bf16.gmra.mxu0 %v95
    %v273 = vpop.f32.mrf.mxu0
    %v274 = vadd.f32 %v260, %v273
    %v275 = vpop.f32.mrf.mxu0
    %276 = vdwg.mxu0
    %277 = vmatpush.bf16.msra.mxu0 %v225
    %278 = vmatpush.bf16.msra.mxu0 %v223
    %279 = vmatpush.bf16.msra.mxu0 %v221
    %280 = vmatpush.bf16.msra.mxu0 %v219
    %281 = vmatpush.bf16.msra.mxu0 %v217
    %282 = vmatpush.bf16.msra.mxu0 %v215
    %283 = vmatpush.bf16.msra.mxu0 %v213
    %284 = vmatpush.bf16.msra.mxu0 %v211
    %285 = vmatmul.bf16.gmra.mxu0 %v96
    %v286 = vpop.f32.mrf.mxu0
    %v287 = vadd.f32 %v274, %v286
    %v288 = vpop.f32.mrf.mxu0
    %289 = vdwg.mxu0
    %290 = vmatpush.bf16.msra.mxu0 %v210
    %291 = vmatpush.bf16.msra.mxu0 %v208
    %292 = vmatpush.bf16.msra.mxu0 %v206
    %293 = vmatpush.bf16.msra.mxu0 %v204
    %294 = vmatpush.bf16.msra.mxu0 %v202
    %295 = vmatpush.bf16.msra.mxu0 %v200
    %296 = vmatpush.bf16.msra.mxu0 %v198
    %297 = vmatpush.bf16.msra.mxu0 %v196
    %298 = vmatmul.bf16.gmra.mxu0 %v95
    %v299 = vpop.f32.mrf.mxu0
    %v300 = vadd.f32 %v261, %v299
    %v301 = vpop.f32.mrf.mxu0
    %302 = vdwg.mxu0
    %303 = vmatpush.bf16.msra.mxu0 %v226
    %304 = vmatpush.bf16.msra.mxu0 %v224
    %305 = vmatpush.bf16.msra.mxu0 %v222
    %306 = vmatpush.bf16.msra.mxu0 %v220
    %307 = vmatpush.bf16.msra.mxu0 %v218
    %308 = vmatpush.bf16.msra.mxu0 %v216
    %309 = vmatpush.bf16.msra.mxu0 %v214
    %310 = vmatpush.bf16.msra.mxu0 %v212
    %311 = vmatmul.bf16.gmra.mxu0 %v96
    %v312 = vpop.f32.mrf.mxu0
    %v313 = vadd.f32 %v300, %v312
    %v314 = vpop.f32.mrf.mxu0
    %315 = vdwg.mxu0
    %vm316 = vcmp.gt.f32.partialorder %v287, 0.0
    %vm317 = vcmp.gt.f32.partialorder %v313, 0.0
    %v318 = vmul.f32 %v287, 0.01
    %v319 = vmul.f32 %v313, 0.01
    %v320 = vsel %vm316, %v287, %v318
    %v321 = vsel %vm317, %v313, %v319
    %v322 = vpack.c.bf16 %v320, %v320
    %v323 = vpack.c.bf16 %v321, %v321
    %v324 = vld [vmem:[#allocation5] sm:$0xf]
    %v325 = vld [vmem:[#allocation5 + $0x4] sm:$0xf]
    %v326 = vld [vmem:[#allocation5 + $0x8] sm:$0xf]
    %v327 = vld [vmem:[#allocation5 + $0xc] sm:$0xf]
    %v328 = vld [vmem:[#allocation5 + $0x10] sm:$0xf]
    %v329 = vld [vmem:[#allocation5 + $0x14] sm:$0xf]
    %v330 = vld [vmem:[#allocation5 + $0x18] sm:$0xf]
    %v331 = vld [vmem:[#allocation5 + $0x1c] sm:$0xf]
    %v332 = vld [vmem:[#allocation5 + $0x20] sm:$0xf]
    %v333 = vld [vmem:[#allocation5 + $0x24] sm:$0xf]
    %v334 = vld [vmem:[#allocation5 + $0x28] sm:$0xf]
    %v335 = vld [vmem:[#allocation5 + $0x2c] sm:$0xf]
    %v336 = vld [vmem:[#allocation5 + $0x30] sm:$0xf]
    %v337 = vld [vmem:[#allocation5 + $0x34] sm:$0xf]
    %v338 = vld [vmem:[#allocation5 + $0x38] sm:$0xf]
    %v339 = vld [vmem:[#allocation5 + $0x3c] sm:$0xf]
    %v340 = vld [vmem:[#allocation5 + $0x40] sm:$0xf]
    %v341 = vld [vmem:[#allocation5 + $0x44] sm:$0xf]
    %v342 = vld [vmem:[#allocation5 + $0x48] sm:$0xf]
    %v343 = vld [vmem:[#allocation5 + $0x4c] sm:$0xf]
    %v344 = vld [vmem:[#allocation5 + $0x50] sm:$0xf]
    %v345 = vld [vmem:[#allocation5 + $0x54] sm:$0xf]
    %v346 = vld [vmem:[#allocation5 + $0x58] sm:$0xf]
    %v347 = vld [vmem:[#allocation5 + $0x5c] sm:$0xf]
    %v348 = vld [vmem:[#allocation5 + $0x60] sm:$0xf]
    %v349 = vld [vmem:[#allocation5 + $0x64] sm:$0xf]
    %v350 = vld [vmem:[#allocation5 + $0x68] sm:$0xf]
    %v351 = vld [vmem:[#allocation5 + $0x6c] sm:$0xf]
    %v352 = vld [vmem:[#allocation5 + $0x70] sm:$0xf]
    %v353 = vld [vmem:[#allocation5 + $0x74] sm:$0xf]
    %v354 = vld [vmem:[#allocation5 + $0x78] sm:$0xf]
    %v355 = vld [vmem:[#allocation5 + $0x7c] sm:$0xf]
    %v356 = vld [vmem:[%s4] sm:$0x1]
    %v389 = vunpack.c.l.b16 %v324
    %v390 = vunpack.c.l.b16 %v325
    %v391 = vunpack.c.l.b16 %v326
    %v392 = vunpack.c.l.b16 %v327
    %v393 = vunpack.c.l.b16 %v328
    %v394 = vunpack.c.l.b16 %v329
    %v395 = vunpack.c.l.b16 %v330
    %v396 = vunpack.c.l.b16 %v331
    %v397 = vunpack.c.l.b16 %v332
    %v398 = vunpack.c.l.b16 %v333
    %v399 = vunpack.c.l.b16 %v334
    %v400 = vunpack.c.l.b16 %v335
    %v401 = vunpack.c.l.b16 %v336
    %v402 = vunpack.c.l.b16 %v337
    %v403 = vunpack.c.l.b16 %v338
    %v404 = vunpack.c.l.b16 %v339
    %v405 = vunpack.c.l.b16 %v340
    %v406 = vunpack.c.l.b16 %v341
    %v407 = vunpack.c.l.b16 %v342
    %v408 = vunpack.c.l.b16 %v343
    %v409 = vunpack.c.l.b16 %v344
    %v410 = vunpack.c.l.b16 %v345
    %v411 = vunpack.c.l.b16 %v346
    %v412 = vunpack.c.l.b16 %v347
    %v413 = vunpack.c.l.b16 %v348
    %v414 = vunpack.c.l.b16 %v349
    %v415 = vunpack.c.l.b16 %v350
    %v416 = vunpack.c.l.b16 %v351
    %v417 = vunpack.c.l.b16 %v352
    %v418 = vunpack.c.l.b16 %v353
    %v419 = vunpack.c.l.b16 %v354
    %v420 = vunpack.c.l.b16 %v355
    %v421 = vpack.c.b16 %v390, %v389
    %v422 = vpack.c.b16 %v392, %v391
    %v423 = vpack.c.b16 %v394, %v393
    %v424 = vpack.c.b16 %v396, %v395
    %v425 = vpack.c.b16 %v398, %v397
    %v426 = vpack.c.b16 %v400, %v399
    %v427 = vpack.c.b16 %v402, %v401
    %v428 = vpack.c.b16 %v404, %v403
    %v429 = vpack.c.b16 %v406, %v405
    %v430 = vpack.c.b16 %v408, %v407
    %v431 = vpack.c.b16 %v410, %v409
    %v432 = vpack.c.b16 %v412, %v411
    %v433 = vpack.c.b16 %v414, %v413
    %v434 = vpack.c.b16 %v416, %v415
    %v435 = vpack.c.b16 %v418, %v417
    %v436 = vpack.c.b16 %v420, %v419
    %453 = vmatpush.bf16.msra.mxu0 %v428
    %454 = vmatpush.bf16.msra.mxu0 %v427
    %455 = vmatpush.bf16.msra.mxu0 %v426
    %456 = vmatpush.bf16.msra.mxu0 %v425
    %457 = vmatpush.bf16.msra.mxu0 %v424
    %458 = vmatpush.bf16.msra.mxu0 %v423
    %459 = vmatpush.bf16.msra.mxu0 %v422
    %460 = vmatpush.bf16.msra.mxu0 %v421
    %461 = vmatmul.bf16.gmra.mxu0 %v322
    %v462 = vpop.f32.mrf.mxu0
    %v463 = vadd.f32 %v356, %v462
    %v464 = vpop.f32.mrf.mxu0
    %465 = vdwg.mxu0
    %466 = vmatpush.bf16.msra.mxu0 %v436
    %467 = vmatpush.bf16.msra.mxu0 %v435
    %468 = vmatpush.bf16.msra.mxu0 %v434
    %469 = vmatpush.bf16.msra.mxu0 %v433
    %470 = vmatpush.bf16.msra.mxu0 %v432
    %471 = vmatpush.bf16.msra.mxu0 %v431
    %472 = vmatpush.bf16.msra.mxu0 %v430
    %473 = vmatpush.bf16.msra.mxu0 %v429
    %474 = vmatmul.bf16.gmra.mxu0 %v323
    %v475 = vpop.f32.mrf.mxu0
    %v476 = vadd.f32 %v463, %v475
    %v477 = vpop.f32.mrf.mxu0
    %478 = vdwg.mxu0
    %vm479 = vcmp.gt.f32.partialorder %v476, 0.0
    %v480 = vmul.f32 %v476, 0.01
    %v481 = vsel %vm479, %v476, %v480
    %v482 = vpack.c.bf16 %v481, %v481
    %v483 = vld [vmem:[%s5] sm:$0xf]
    %v484 = vld [vmem:[%s5 + $0x4] sm:$0xf]
    %v485 = vld [vmem:[%s5 + $0x8] sm:$0xf]
    %v486 = vld [vmem:[%s5 + $0xc] sm:$0xf]
    %v487 = vld [vmem:[%s5 + $0x10] sm:$0xf]
    %v488 = vld [vmem:[%s5 + $0x14] sm:$0xf]
    %v489 = vld [vmem:[%s5 + $0x18] sm:$0xf]
    %v490 = vld [vmem:[%s5 + $0x1c] sm:$0xf]
    %v491 = vld [vmem:[%s5 + $0x20] sm:$0xf]
    %v492 = vld [vmem:[%s5 + $0x24] sm:$0xf]
    %v493 = vld [vmem:[%s5 + $0x28] sm:$0xf]
    %v494 = vld [vmem:[%s5 + $0x2c] sm:$0xf]
    %v495 = vld [vmem:[%s5 + $0x30] sm:$0xf]
    %v496 = vld [vmem:[%s5 + $0x34] sm:$0xf]
    %v497 = vld [vmem:[%s5 + $0x38] sm:$0xf]
    %v498 = vld [vmem:[%s5 + $0x3c] sm:$0xf]
    %v499 = vld [vmem:[%s6] sm:$0x1]
    %v516 = vunpack.c.l.b16 %v483
    %v517 = vunpack.c.l.b16 %v484
    %v518 = vunpack.c.l.b16 %v485
    %v519 = vunpack.c.l.b16 %v486
    %v520 = vunpack.c.l.b16 %v487
    %v521 = vunpack.c.l.b16 %v488
    %v522 = vunpack.c.l.b16 %v489
    %v523 = vunpack.c.l.b16 %v490
    %v524 = vunpack.c.l.b16 %v491
    %v525 = vunpack.c.l.b16 %v492
    %v526 = vunpack.c.l.b16 %v493
    %v527 = vunpack.c.l.b16 %v494
    %v528 = vunpack.c.l.b16 %v495
    %v529 = vunpack.c.l.b16 %v496
    %v530 = vunpack.c.l.b16 %v497
    %v531 = vunpack.c.l.b16 %v498
    %v532 = vpack.c.b16 %v517, %v516
    %v533 = vpack.c.b16 %v519, %v518
    %v534 = vpack.c.b16 %v521, %v520
    %v535 = vpack.c.b16 %v523, %v522
    %v536 = vpack.c.b16 %v525, %v524
    %v537 = vpack.c.b16 %v527, %v526
    %v538 = vpack.c.b16 %v529, %v528
    %v539 = vpack.c.b16 %v531, %v530
    %548 = vmatpush.bf16.msra.mxu0 %v539
    %549 = vmatpush.bf16.msra.mxu0 %v538
    %550 = vmatpush.bf16.msra.mxu0 %v537
    %551 = vmatpush.bf16.msra.mxu0 %v536
    %552 = vmatpush.bf16.msra.mxu0 %v535
    %553 = vmatpush.bf16.msra.mxu0 %v534
    %554 = vmatpush.bf16.msra.mxu0 %v533
    %555 = vmatpush.bf16.msra.mxu0 %v532
    %556 = vmatmul.bf16.gmra.mxu0 %v482
    %v557 = vpop.f32.mrf.mxu0
    %v558 = vadd.f32 %v499, %v557
    %v559 = vpop.f32.mrf.mxu0
    %560 = vdwg.mxu0
    %v561 = vxor.u32 %v558, 2147483648
    %v562 = vmul.f32 %v561, 1.442695
    %v563 = vpow.pop %v562
    %v564 = vadd.f32 %v563, 1.0
    %v565 = vrcp.pop %v564
    %v566 = vmul.f32 %v564, %v565
    %v567 = vsub.f32 1.0, %v566
    %v568 = vmul.f32 %v565, %v567
    %v569 = vadd.f32 %v565, %v568
    %vm570 = vweird.f32 %v564
    %vm571 = vweird.f32 %v565
    %vm572 = vmor %vm570, %vm571
    %v573 = vsel %vm572, %v565, %v569
    %v574 = vand.u32 2147483647, %v564
    %vm575 = vcmp.eq.f32.partialorder %v574, 8.507059e+37
    %v576 = vand.u32 %v564, 2147483648
    %v577 = vor.u32 1.1754944e-38, %v576
    %v578 = vsel %vm575, %v577, %v573
    %v579 = vmul.f32 1.0, %v578
    %vm580 = vcmask 319488
    %581 = vst.msk [vmem:[#allocation7] sm:$0x1] %vm580, %v579
    // Predicated region
    $region38: #{tpu_custom_call.1} parent=1 // pred_check
      _
    $region39: #{tpu_custom_call.1} parent=1 // pred_check_branch
      %583 = sbr.rel (0) target = $region41
    $region40: #{tpu_custom_call.1} parent=1 // pred_region
      %585 = vsyncadd [#allocation4], 0
      %s587 = sshll.u32 [#allocation7], 4
      %s588 = int_to_ptr.vmem [resolvable:$true] %s587
      %s589 = sshll.u32 %s7, 4
      %s590 = int_to_ptr.hbm [resolvable:$true] %s589
      %592 = dma.vmem_to_hbm [thread:$0]  %s588, 16, %s590, [#allocation4]
    $region41: #{tpu_custom_call.1} parent=1 // pred_fallthru
      _
    // Predicated region
    $region42: #{tpu_custom_call.1} parent=1 // pred_check
      _
    $region43: #{tpu_custom_call.1} parent=1 // pred_check_branch
      %594 = sbr.rel (0) target = $region45
    $region44: #{tpu_custom_call.1} parent=1 // pred_region
      %596 = dma.done [#allocation4], 16
    $region45: #{tpu_custom_call.1} parent=1 // pred_fallthru
      _
    %597 = vsyncpa [#allocation3], 1
    %598 = vsyncpa [#allocation6], 1
    %599 = vsyncpa [#allocation4], 1

</llo_original>
